<compile_context>
chip_gen: v7x
topology: tpu7x:2x2x1
jax: 0.10.0
libtpu: 0.0.40
codegen_flags: <defaults>
</compile_context>

<pallas_src>
import jax
import jax.numpy as jnp
from jax.experimental import pallas as pl
from jax.experimental.pallas import tpu as pltpu

BN_EPS = 1e-5
LANES = 128


def _round_up(n, m):
    return (n + m - 1) // m * m


def _layout(input_size):
    """Static row offsets of the packed [R, 128] parameter slab."""
    w1 = 0                                   # rows w1 .. w1+input_size      (cols 0..63)
    w2 = _round_up(input_size, 8)            # rows w2 .. w2+64              (cols 0..127)
    w5 = w2 + 64                             # rows w5 .. w5+128             (cols 0..31)
    vecs = w5 + 128                          # 8 rows of small vectors
    total = vecs + 8
    return dict(w1=w1, w2=w2, w5=w5, vecs=vecs, total=total)


def _bn_relu(h, gamma, beta):
    """Fused BatchNorm1d (train mode, biased var) + ReLU.

    scale/shift are computed on [1,128] rows (1/B of the cost); the per-element
    work is 2 full-width VALU passes (mul, add) + the ReLU max.
    Padded lanes (gamma=beta=0, h=0) stay exactly 0.
    """
    mean = jnp.mean(h, axis=0, keepdims=True)
    msq = jnp.mean(h * h, axis=0, keepdims=True)
    var = jnp.maximum(msq - mean * mean, 0.0)
    scale = gamma * jax.lax.rsqrt(var + BN_EPS)
    shift = beta - mean * scale
    return jnp.maximum(h * scale + shift, 0.0)


def _make_kernel(input_size, L):
    w1, w2, w5, v = L["w1"], L["w2"], L["w5"], L["vecs"]

    def kernel(x_ref, p_ref, o_ref):
        x = x_ref[...]                                          # [B, input_size]

        # fc1 (bias cancelled by BN) -> bn1 -> relu   (valid cols 0..63, rest stay 0)
        h = jnp.dot(x, p_ref[w1:w1 + input_size, :],
                    preferred_element_type=jnp.float32)
        h = _bn_relu(h, p_ref[v + 0:v + 1, :], p_ref[v + 1:v + 2, :])

        # fc2 (K=64) -> bn2 -> relu   (all 128 cols valid)
        h = jnp.dot(h[:, :64], p_ref[w2:w2 + 64, :],
                    preferred_element_type=jnp.float32)
        h = _bn_relu(h, p_ref[v + 2:v + 3, :], p_ref[v + 3:v + 4, :])

        # fc5 (K=128) -> bn5 -> relu  (valid cols 0..31)
        h = jnp.dot(h, p_ref[w5:w5 + 128, :],
                    preferred_element_type=jnp.float32)
        h = _bn_relu(h, p_ref[v + 4:v + 5, :], p_ref[v + 5:v + 6, :])

        # fc6 (out_features=1): elementwise mul + lane reduce (XLU), then sigmoid via
        # tanh (EUP slot).  Output is a true [B, 1] store.
        w6_row = p_ref[v + 6:v + 7, :]                          # [1,128], lanes 0..31 real
        b6 = p_ref[v + 7:v + 8, 0:1]                            # [1,1]
        z = jnp.sum(h * w6_row, axis=-1, keepdims=True) + b6    # [B,1]
        o_ref[...] = 0.5 * (jnp.tanh(0.5 * z) + 1.0)

    return kernel


def _pack_params(params, input_size, L):
    """Pack weights / BN params into one [R, 128] f32 slab.

    fc1/fc2/fc5 biases are intentionally omitted: adding a per-column constant
    before train-mode BatchNorm is a no-op (cancelled by mean subtraction).
    All padding entries are exactly zero so padded lanes stay zero through every layer.
    """
    slab = jnp.zeros((L["total"], LANES), jnp.float32)
    slab = slab.at[L["w1"]:L["w1"] + input_size, 0:64].set(params["w1"])
    slab = slab.at[L["w2"]:L["w2"] + 64, 0:128].set(params["w2"])
    slab = slab.at[L["w5"]:L["w5"] + 128, 0:32].set(params["w5"])
    v = L["vecs"]
    slab = slab.at[v + 0, 0:64].set(params["g1"].reshape(-1))
    slab = slab.at[v + 1, 0:64].set(params["be1"].reshape(-1))
    slab = slab.at[v + 2, 0:128].set(params["g2"].reshape(-1))
    slab = slab.at[v + 3, 0:128].set(params["be2"].reshape(-1))
    slab = slab.at[v + 4, 0:32].set(params["g5"].reshape(-1))
    slab = slab.at[v + 5, 0:32].set(params["be5"].reshape(-1))
    slab = slab.at[v + 6, 0:32].set(params["w6"].reshape(-1))   # w6: [32,1] -> row
    slab = slab.at[v + 7, 0:1].set(params["b6"].reshape(-1))
    return slab


def mlp_forward(x, params):
    """x: [B, input_size] float32. Returns [B] float32 (torch's .squeeze())."""
    B, input_size = x.shape
    L = _layout(input_size)
    slab = _pack_params(params, input_size, L)

    vmem_spec = pl.BlockSpec(memory_space=pltpu.VMEM)

    # Advisory cost + VMEM sizing (activations are [B,128] f32; give 2x headroom).
    flops = 2 * B * (input_size * 64 + 64 * 128 + 128 * 32 + 32)
    bytes_accessed = x.size * 4 + slab.size * 4 + B * 4
    footprint = x.size * 4 + slab.size * 4 + 6 * B * LANES * 4 + B * 4
    vmem_limit = int(min(96 << 20, max(16 << 20, 2 * footprint)))

    out = pl.pallas_call(
        _make_kernel(input_size, L),
        out_shape=jax.ShapeDtypeStruct((B, 1), jnp.float32),
        in_specs=[vmem_spec, vmem_spec],
        out_specs=vmem_spec,
        cost_estimate=pl.CostEstimate(
            flops=flops, transcendentals=B + 3 * LANES,
            bytes_accessed=bytes_accessed),
        compiler_params=pltpu.CompilerParams(vmem_limit_bytes=vmem_limit),
    )(x, slab)
    return jnp.squeeze(out, axis=-1)


def init_params(key, input_size):
    """PyTorch Linear default init: U(-1/sqrt(fan_in), ...); BN gamma=1, beta=0."""
    dims = [(input_size, 64), (64, 128), (128, 32), (32, 1)]
    names = ["1", "2", "5", "6"]
    params = {}
    for (fan_in, fan_out), name in zip(dims, names):
        key, kw, kb = jax.random.split(key, 3)
        bound = 1.0 / (fan_in ** 0.5)
        params[f"w{name}"] = jax.random.uniform(
            kw, (fan_in, fan_out), jnp.float32, -bound, bound)
        params[f"b{name}"] = jax.random.uniform(
            kb, (1, fan_out), jnp.float32, -bound, bound)
    for name, d in zip(["1", "2", "5"], [64, 128, 32]):
        params[f"g{name}"] = jnp.ones((1, d), jnp.float32)
        params[f"be{name}"] = jnp.zeros((1, d), jnp.float32)
    return params


def reference_forward(x, params):
    """Pure-JAX reference mirroring the PyTorch forward (train-mode BN, ReLU, with biases)."""
    def bn_relu(h, g, b):
        mean = jnp.mean(h, axis=0, keepdims=True)
        var = jnp.mean((h - mean) ** 2, axis=0, keepdims=True)
        return jnp.maximum((h - mean) / jnp.sqrt(var + BN_EPS) * g + b, 0.0)

    h = bn_relu(x @ params["w1"] + params["b1"], params["g1"], params["be1"])
    h = bn_relu(h @ params["w2"] + params["b2"], params["g2"], params["be2"])
    h = bn_relu(h @ params["w5"] + params["b5"], params["g5"], params["be5"])
    z = h @ params["w6"] + params["b6"]
    return jnp.squeeze(jax.nn.sigmoid(z), axis=-1)


if __name__ == "__main__":
    key = jax.random.PRNGKey(0)
    key, kx, kp = jax.random.split(key, 3)

    batch = 8
    input_size = 32
    x = jax.random.normal(kx, (batch, input_size), jnp.float32)
    params = init_params(kp, input_size)

    out = jax.block_until_ready(mlp_forward(x, params))
    ref = reference_forward(x, params)

    assert out.shape == (batch,), out.shape
    assert jnp.allclose(out, ref, atol=1e-4, rtol=1e-4), (out, ref)
    print("KERNEL_OK")
</pallas_src>

<mosaic_0001>
module attributes {stable_mosaic.version = 11 : i64} {
  func.func @kernel(%arg0: memref<8x32xf32, #tpu.memory_space<vmem>>, %arg1: memref<232x128xf32, #tpu.memory_space<vmem>>, %arg2: memref<8x1xf32, #tpu.memory_space<vmem>>) attributes {dimension_semantics = [], scalar_prefetch = 0 : i64, scratch_operands = 0 : i64, tpu.core_type = #tpu.core_type<tc>} {
    %c0 = arith.constant 0 : index
    %c0_0 = arith.constant 0 : index
    %0 = vector.load %arg0[%c0, %c0_0] : memref<8x32xf32, #tpu.memory_space<vmem>>, vector<8x32xf32>
    %c0_1 = arith.constant 0 : index
    %c0_2 = arith.constant 0 : index
    %1 = vector.load %arg1[%c0_1, %c0_2] : memref<232x128xf32, #tpu.memory_space<vmem>>, vector<32x128xf32>
    %cst = arith.constant dense<0.000000e+00> : vector<8x128xf32>
    %2 = tpu.matmul %0, %1, %cst {dimension_numbers = #tpu.dot_dimension_numbers<[1], [0], [0], [1], [0, 0, 1, 1], [], []>} : vector<8x32xf32>, vector<32x128xf32>, vector<8x128xf32> -> vector<8x128xf32>
    %c224 = arith.constant 224 : index
    %c0_3 = arith.constant 0 : index
    %3 = vector.load %arg1[%c224, %c0_3] : memref<232x128xf32, #tpu.memory_space<vmem>>, vector<1x128xf32>
    %c225 = arith.constant 225 : index
    %c0_4 = arith.constant 0 : index
    %4 = vector.load %arg1[%c225, %c0_4] : memref<232x128xf32, #tpu.memory_space<vmem>>, vector<1x128xf32>
    %cst_5 = arith.constant dense<0.000000e+00> : vector<128xf32>
    %5 = vector.multi_reduction <add>, %2, %cst_5 [0] : vector<8x128xf32> to vector<128xf32>
    %6 = vector.shape_cast %5 : vector<128xf32> to vector<1x128xf32>
    %cst_6 = arith.constant 8.000000e+00 : f32
    %7 = vector.broadcast %cst_6 : f32 to vector<1x128xf32>
    %8 = arith.divf %6, %7 : vector<1x128xf32>
    %9 = arith.mulf %2, %2 : vector<8x128xf32>
    %cst_7 = arith.constant dense<0.000000e+00> : vector<128xf32>
    %10 = vector.multi_reduction <add>, %9, %cst_7 [0] : vector<8x128xf32> to vector<128xf32>
    %11 = vector.shape_cast %10 : vector<128xf32> to vector<1x128xf32>
    %cst_8 = arith.constant 8.000000e+00 : f32
    %12 = vector.broadcast %cst_8 : f32 to vector<1x128xf32>
    %13 = arith.divf %11, %12 : vector<1x128xf32>
    %14 = arith.mulf %8, %8 : vector<1x128xf32>
    %15 = arith.subf %13, %14 : vector<1x128xf32>
    %cst_9 = arith.constant 0.000000e+00 : f32
    %16 = vector.broadcast %cst_9 : f32 to vector<1x128xf32>
    %17 = arith.maximumf %15, %16 : vector<1x128xf32>
    %cst_10 = arith.constant 9.99999974E-6 : f32
    %18 = vector.broadcast %cst_10 : f32 to vector<1x128xf32>
    %19 = arith.addf %17, %18 : vector<1x128xf32>
    %20 = math.rsqrt %19 : vector<1x128xf32>
    %21 = arith.mulf %3, %20 : vector<1x128xf32>
    %22 = arith.mulf %8, %21 : vector<1x128xf32>
    %23 = arith.subf %4, %22 : vector<1x128xf32>
    %24 = vector.broadcast %21 : vector<1x128xf32> to vector<8x128xf32>
    %25 = arith.mulf %2, %24 : vector<8x128xf32>
    %26 = vector.broadcast %23 : vector<1x128xf32> to vector<8x128xf32>
    %27 = arith.addf %25, %26 : vector<8x128xf32>
    %cst_11 = arith.constant 0.000000e+00 : f32
    %28 = vector.broadcast %cst_11 : f32 to vector<8x128xf32>
    %29 = arith.maximumf %27, %28 : vector<8x128xf32>
    %30 = vector.extract_strided_slice %29 {offsets = [0, 0], sizes = [8, 64], strides = [1, 1]} : vector<8x128xf32> to vector<8x64xf32>
    %c32 = arith.constant 32 : index
    %c0_12 = arith.constant 0 : index
    %31 = vector.load %arg1[%c32, %c0_12] : memref<232x128xf32, #tpu.memory_space<vmem>>, vector<64x128xf32>
    %cst_13 = arith.constant dense<0.000000e+00> : vector<8x128xf32>
    %32 = tpu.matmul %30, %31, %cst_13 {dimension_numbers = #tpu.dot_dimension_numbers<[1], [0], [0], [1], [0, 0, 1, 1], [], []>} : vector<8x64xf32>, vector<64x128xf32>, vector<8x128xf32> -> vector<8x128xf32>
    %c226 = arith.constant 226 : index
    %c0_14 = arith.constant 0 : index
    %33 = vector.load %arg1[%c226, %c0_14] : memref<232x128xf32, #tpu.memory_space<vmem>>, vector<1x128xf32>
    %c227 = arith.constant 227 : index
    %c0_15 = arith.constant 0 : index
    %34 = vector.load %arg1[%c227, %c0_15] : memref<232x128xf32, #tpu.memory_space<vmem>>, vector<1x128xf32>
    %cst_16 = arith.constant dense<0.000000e+00> : vector<128xf32>
    %35 = vector.multi_reduction <add>, %32, %cst_16 [0] : vector<8x128xf32> to vector<128xf32>
    %36 = vector.shape_cast %35 : vector<128xf32> to vector<1x128xf32>
    %cst_17 = arith.constant 8.000000e+00 : f32
    %37 = vector.broadcast %cst_17 : f32 to vector<1x128xf32>
    %38 = arith.divf %36, %37 : vector<1x128xf32>
    %39 = arith.mulf %32, %32 : vector<8x128xf32>
    %cst_18 = arith.constant dense<0.000000e+00> : vector<128xf32>
    %40 = vector.multi_reduction <add>, %39, %cst_18 [0] : vector<8x128xf32> to vector<128xf32>
    %41 = vector.shape_cast %40 : vector<128xf32> to vector<1x128xf32>
    %cst_19 = arith.constant 8.000000e+00 : f32
    %42 = vector.broadcast %cst_19 : f32 to vector<1x128xf32>
    %43 = arith.divf %41, %42 : vector<1x128xf32>
    %44 = arith.mulf %38, %38 : vector<1x128xf32>
    %45 = arith.subf %43, %44 : vector<1x128xf32>
    %cst_20 = arith.constant 0.000000e+00 : f32
    %46 = vector.broadcast %cst_20 : f32 to vector<1x128xf32>
    %47 = arith.maximumf %45, %46 : vector<1x128xf32>
    %cst_21 = arith.constant 9.99999974E-6 : f32
    %48 = vector.broadcast %cst_21 : f32 to vector<1x128xf32>
    %49 = arith.addf %47, %48 : vector<1x128xf32>
    %50 = math.rsqrt %49 : vector<1x128xf32>
    %51 = arith.mulf %33, %50 : vector<1x128xf32>
    %52 = arith.mulf %38, %51 : vector<1x128xf32>
    %53 = arith.subf %34, %52 : vector<1x128xf32>
    %54 = vector.broadcast %51 : vector<1x128xf32> to vector<8x128xf32>
    %55 = arith.mulf %32, %54 : vector<8x128xf32>
    %56 = vector.broadcast %53 : vector<1x128xf32> to vector<8x128xf32>
    %57 = arith.addf %55, %56 : vector<8x128xf32>
    %cst_22 = arith.constant 0.000000e+00 : f32
    %58 = vector.broadcast %cst_22 : f32 to vector<8x128xf32>
    %59 = arith.maximumf %57, %58 : vector<8x128xf32>
    %c96 = arith.constant 96 : index
    %c0_23 = arith.constant 0 : index
    %60 = vector.load %arg1[%c96, %c0_23] : memref<232x128xf32, #tpu.memory_space<vmem>>, vector<128x128xf32>
    %cst_24 = arith.constant dense<0.000000e+00> : vector<8x128xf32>
    %61 = tpu.matmul %59, %60, %cst_24 {dimension_numbers = #tpu.dot_dimension_numbers<[1], [0], [0], [1], [0, 0, 1, 1], [], []>} : vector<8x128xf32>, vector<128x128xf32>, vector<8x128xf32> -> vector<8x128xf32>
    %c228 = arith.constant 228 : index
    %c0_25 = arith.constant 0 : index
    %62 = vector.load %arg1[%c228, %c0_25] : memref<232x128xf32, #tpu.memory_space<vmem>>, vector<1x128xf32>
    %c229 = arith.constant 229 : index
    %c0_26 = arith.constant 0 : index
    %63 = vector.load %arg1[%c229, %c0_26] : memref<232x128xf32, #tpu.memory_space<vmem>>, vector<1x128xf32>
    %cst_27 = arith.constant dense<0.000000e+00> : vector<128xf32>
    %64 = vector.multi_reduction <add>, %61, %cst_27 [0] : vector<8x128xf32> to vector<128xf32>
    %65 = vector.shape_cast %64 : vector<128xf32> to vector<1x128xf32>
    %cst_28 = arith.constant 8.000000e+00 : f32
    %66 = vector.broadcast %cst_28 : f32 to vector<1x128xf32>
    %67 = arith.divf %65, %66 : vector<1x128xf32>
    %68 = arith.mulf %61, %61 : vector<8x128xf32>
    %cst_29 = arith.constant dense<0.000000e+00> : vector<128xf32>
    %69 = vector.multi_reduction <add>, %68, %cst_29 [0] : vector<8x128xf32> to vector<128xf32>
    %70 = vector.shape_cast %69 : vector<128xf32> to vector<1x128xf32>
    %cst_30 = arith.constant 8.000000e+00 : f32
    %71 = vector.broadcast %cst_30 : f32 to vector<1x128xf32>
    %72 = arith.divf %70, %71 : vector<1x128xf32>
    %73 = arith.mulf %67, %67 : vector<1x128xf32>
    %74 = arith.subf %72, %73 : vector<1x128xf32>
    %cst_31 = arith.constant 0.000000e+00 : f32
    %75 = vector.broadcast %cst_31 : f32 to vector<1x128xf32>
    %76 = arith.maximumf %74, %75 : vector<1x128xf32>
    %cst_32 = arith.constant 9.99999974E-6 : f32
    %77 = vector.broadcast %cst_32 : f32 to vector<1x128xf32>
    %78 = arith.addf %76, %77 : vector<1x128xf32>
    %79 = math.rsqrt %78 : vector<1x128xf32>
    %80 = arith.mulf %62, %79 : vector<1x128xf32>
    %81 = arith.mulf %67, %80 : vector<1x128xf32>
    %82 = arith.subf %63, %81 : vector<1x128xf32>
    %83 = vector.broadcast %80 : vector<1x128xf32> to vector<8x128xf32>
    %84 = arith.mulf %61, %83 : vector<8x128xf32>
    %85 = vector.broadcast %82 : vector<1x128xf32> to vector<8x128xf32>
    %86 = arith.addf %84, %85 : vector<8x128xf32>
    %cst_33 = arith.constant 0.000000e+00 : f32
    %87 = vector.broadcast %cst_33 : f32 to vector<8x128xf32>
    %88 = arith.maximumf %86, %87 : vector<8x128xf32>
    %c230 = arith.constant 230 : index
    %c0_34 = arith.constant 0 : index
    %89 = vector.load %arg1[%c230, %c0_34] : memref<232x128xf32, #tpu.memory_space<vmem>>, vector<1x128xf32>
    %c231 = arith.constant 231 : index
    %c0_35 = arith.constant 0 : index
    %90 = vector.load %arg1[%c231, %c0_35] : memref<232x128xf32, #tpu.memory_space<vmem>>, vector<1x1xf32>
    %91 = vector.broadcast %89 : vector<1x128xf32> to vector<8x128xf32>
    %92 = arith.mulf %88, %91 : vector<8x128xf32>
    %cst_36 = arith.constant dense<0.000000e+00> : vector<8xf32>
    %93 = vector.multi_reduction <add>, %92, %cst_36 [1] : vector<8x128xf32> to vector<8xf32>
    %94 = vector.shape_cast %93 : vector<8xf32> to vector<8x1xf32>
    %95 = vector.broadcast %90 : vector<1x1xf32> to vector<8x1xf32>
    %96 = arith.addf %94, %95 : vector<8x1xf32>
    %cst_37 = arith.constant 5.000000e-01 : f32
    %97 = vector.broadcast %cst_37 : f32 to vector<8x1xf32>
    %98 = arith.mulf %97, %96 : vector<8x1xf32>
    %99 = math.tanh %98 : vector<8x1xf32>
    %cst_38 = arith.constant 1.000000e+00 : f32
    %100 = vector.broadcast %cst_38 : f32 to vector<8x1xf32>
    %101 = arith.addf %99, %100 : vector<8x1xf32>
    %cst_39 = arith.constant 5.000000e-01 : f32
    %102 = vector.broadcast %cst_39 : f32 to vector<8x1xf32>
    %103 = arith.mulf %102, %101 : vector<8x1xf32>
    %c0_40 = arith.constant 0 : index
    %c0_41 = arith.constant 0 : index
    %104 = vector.load %arg2[%c0_40, %c0_41] : memref<8x1xf32, #tpu.memory_space<vmem>>, vector<8x1xf32>
    tpu.vector_store %arg2[%c0_40, %c0_41], %103 {strides = array<i32>} : memref<8x1xf32, #tpu.memory_space<vmem>>, vector<8x1xf32>,
    return
  }
}

</mosaic_0001>

<llo_original>
// kernel: tpu_custom_call.1
$region0: #{tpu_custom_call.1}
  #allocation0 [shape = 'u32[]', space=smem, size = 0x4, offset = 0x4, fixed_abs, tag = 'smem constant byte address 0x4 - core index']
  #allocation1 [shape = 'u32[144,128]{1,0:T(1,128)}', space=vmem, size = 0x12000, scoped, tag = 'internal scratch']
  %s0 = inlined_call_operand.hbm [shape: f32[8,32], index: 0, kind: input, shape index: {}]
  %s1 = inlined_call_operand.hbm [shape: f32[232,128], index: 1, kind: input, shape index: {}]
  %s2 = inlined_call_operand.vmem [shape: f32[8,1], index: 2, kind: output, shape index: {}]
  %s3 = sld [smem:[#allocation0]]
  $region26: #{tpu_custom_call.1} parent=0
    _
  %s5 = ssub.s32 1, %s3
  %s6 = scalar_select 0, %s5, %s3
  $region1: #{tpu_custom_call.1} parent=0
    #allocation2 [shape = 'u8[4096]{0}', space=vmem, size = 0x1000, scoped, tag = 'input window, operand 0, single buffered']
    #allocation3 [shape = 's32[1]{0}', space=sflag, size = 0x4, scoped, tag = 'scoped memory for tpu_custom_call.1']
    #allocation4 [shape = 'u8[118784]{0}', space=vmem, size = 0x1d000, scoped, tag = 'input window, operand 1, single buffered']
    #allocation5 [shape = 's32[1]{0}', space=sflag, size = 0x4, scoped, tag = 'scoped memory for tpu_custom_call.1']
    %7 = vsyncpa [#allocation3], 0
    %8 = vsyncpa [#allocation5], 0
    // Predicated region
    $region2: #{tpu_custom_call.1} parent=1 // pred_check
      _
    $region3: #{tpu_custom_call.1} parent=1 // pred_check_branch
      %10 = sbr.rel (0) target = $region5
    $region4: #{tpu_custom_call.1} parent=1 // pred_region
      %s12 = ssub.s32 128, 128
      %13 = vsyncadd [#allocation3], %s12
      %s15 = sshll.u32 [#allocation2], 4
      %s16 = int_to_ptr.vmem [resolvable:$true] %s15
      %18 = dma.hbm_to_vmem [thread:$0]  %s0, 128, %s16, [#allocation3]
    $region5: #{tpu_custom_call.1} parent=1 // pred_fallthru
      _
    // Predicated region
    $region6: #{tpu_custom_call.1} parent=1 // pred_check
      _
    $region7: #{tpu_custom_call.1} parent=1 // pred_check_branch
      %20 = sbr.rel (0) target = $region9
    $region8: #{tpu_custom_call.1} parent=1 // pred_region
      %s22 = ssub.s32 3712, 3712
      %23 = vsyncadd [#allocation5], %s22
      %s24 = sshll.u32 [#allocation4], 4
      %s25 = int_to_ptr.vmem [resolvable:$true] %s24
      %30 = dma.hbm_to_vmem [thread:$0]  %s1, 3712, %s25, [#allocation5], 128, 128, 8
    $region9: #{tpu_custom_call.1} parent=1 // pred_fallthru
      _
    // Predicated region
    $region10: #{tpu_custom_call.1} parent=1 // pred_check
      _
    $region11: #{tpu_custom_call.1} parent=1 // pred_check_branch
      %32 = sbr.rel (0) target = $region13
    $region12: #{tpu_custom_call.1} parent=1 // pred_region
      %33 = dma.done [#allocation3], 128
    $region13: #{tpu_custom_call.1} parent=1 // pred_fallthru
      _
    // Predicated region
    $region14: #{tpu_custom_call.1} parent=1 // pred_check
      _
    $region15: #{tpu_custom_call.1} parent=1 // pred_check_branch
      %35 = sbr.rel (0) target = $region17
    $region16: #{tpu_custom_call.1} parent=1 // pred_region
      %36 = dma.done [#allocation5], 3712
    $region17: #{tpu_custom_call.1} parent=1 // pred_fallthru
      _
    %v37 = vld [vmem:[#allocation2] sm:$0xff]
    %v38 = vld [vmem:[#allocation4] sm:$0xff]
    %v39 = vld [vmem:[#allocation4 + $0x8] sm:$0xff]
    %v40 = vld [vmem:[#allocation4 + $0x10] sm:$0xff]
    %v41 = vld [vmem:[#allocation4 + $0x18] sm:$0xff]
    %vm42 = vcmask 261120
    %v44 = vsel %vm42, %v37, 0
    %46 = vmatprep.subr.mxu0 0.0
    %47 = vmatpush1.msra.mxu0 %v38
    %48 = vmatprep.subr.mxu0 0.0
    %49 = vmatpush1.msra.mxu0 %v39
    %50 = vmatprep.subr.mxu0 0.0
    %51 = vmatpush1.msra.mxu0 %v40
    %52 = vmatprep.subr.mxu0 0.0
    %53 = vmatpush1.msra.mxu0 %v41
    %54 = vmatprep.subr.mxu0 0.0
    %55 = vmatpush1.msra.mxu0 0.0
    %56 = vmatprep.subr.mxu0 0.0
    %57 = vmatpush1.msra.mxu0 0.0
    %58 = vmatprep.subr.mxu0 0.0
    %59 = vmatpush1.msra.mxu0 0.0
    %60 = vmatprep.subr.mxu0 0.0
    %61 = vmatpush1.msra.mxu0 0.0
    %62 = vmatprep.subr.mxu0 0.0
    %63 = vmatpush1.msra.mxu0 0.0
    %64 = vmatprep.subr.mxu0 0.0
    %65 = vmatpush1.msra.mxu0 0.0
    %66 = vmatprep.subr.mxu0 0.0
    %67 = vmatpush1.msra.mxu0 0.0
    %68 = vmatprep.subr.mxu0 0.0
    %69 = vmatpush1.msra.mxu0 0.0
    %70 = vmatprep.subr.mxu0 0.0
    %71 = vmatpush1.msra.mxu0 0.0
    %72 = vmatprep.subr.mxu0 0.0
    %73 = vmatpush1.msra.mxu0 0.0
    %74 = vmatprep.subr.mxu0 0.0
    %75 = vmatpush1.msra.mxu0 0.0
    %76 = vmatprep.subr.mxu0 0.0
    %77 = vmatpush1.msra.mxu0 0.0
    %78 = vmatprep.subr.mxu0 0.0
    %79 = vmatpush1.msra.mxu0 0.0
    %80 = vmatprep.subr.mxu0 0.0
    %81 = vmatpush1.msra.mxu0 0.0
    %82 = vmatprep.subr.mxu0 0.0
    %83 = vmatpush1.msra.mxu0 0.0
    %84 = vmatprep.subr.mxu0 0.0
    %85 = vmatpush1.msra.mxu0 0.0
    %86 = vmatprep.subr.mxu0 0.0
    %87 = vmatpush1.msra.mxu0 0.0
    %88 = vmatprep.subr.mxu0 0.0
    %89 = vmatpush1.msra.mxu0 0.0
    %90 = vmatprep.subr.mxu0 0.0
    %91 = vmatpush1.msra.mxu0 0.0
    %92 = vmatprep.subr.mxu0 0.0
    %93 = vmatpush1.msra.mxu0 0.0
    %94 = vmatprep.subr.mxu0 0.0
    %95 = vmatpush1.msra.mxu0 0.0
    %96 = vmatprep.subr.mxu0 0.0
    %97 = vmatpush1.msra.mxu0 0.0
    %98 = vmatprep.subr.mxu0 0.0
    %99 = vmatpush1.msra.mxu0 0.0
    %100 = vmatprep.subr.mxu0 0.0
    %101 = vmatpush1.msra.mxu0 0.0
    %102 = vmatprep.subr.mxu0 0.0
    %103 = vmatpush1.msra.mxu0 0.0
    %104 = vmatprep.subr.mxu0 0.0
    %105 = vmatpush1.msra.mxu0 0.0
    %106 = vmatprep.subr.mxu0 0.0
    %107 = vmatpush1.msra.mxu0 0.0
    %108 = vmatprep.subr.mxu0 0.0
    %109 = vmatpush1.msra.mxu0 0.0
    %110 = vmatprep.mubr.f32.mxu0 0.0
    %111 = vmatmul.mubr.f32.gmra.mrb[0].mxu0 %v44
    %v112 = vpop.f32.mrb[0].mxu0
    %v113 = vadd.f32 0.0, %v112
    %v114 = vpop.f32.mrb[0].mxu0
    %115 = vdwg.mxu0
    %v116 = vld [vmem:[#allocation4 + $0xe0] sm:$0x1]
    %v117 = vld [vmem:[#allocation4 + $0xe1] sm:$0x1]
    %v118 = vrot.slane %v113, 4
    %v119 = vadd.f32 %v113, %v118
    %v120 = vrot.slane %v119, 2
    %v121 = vadd.f32 %v119, %v120
    %v122 = vrot.slane %v121, 1
    %v123 = vadd.f32 %v121, %v122
    %v124 = vrcp.pop 8.0
    %v125 = vmul.f32 %v123, %v124
    %v126 = vmul.f32 %v113, %v113
    %v127 = vrot.slane %v126, 4
    %v128 = vadd.f32 %v126, %v127
    %v129 = vrot.slane %v128, 2
    %v130 = vadd.f32 %v128, %v129
    %v131 = vrot.slane %v130, 1
    %v132 = vadd.f32 %v130, %v131
    %v133 = vmul.f32 %v132, %v124
    %v134 = vmul.f32 %v125, %v125
    %v135 = vsub.f32 %v133, %v134
    %v136 = vmax.f32 %v135, 0.0
    %v137 = vadd.f32 %v136, 1e-05
    %v138 = vrsqrt.pop %v137
    %v139 = vmul.f32 %v116, %v138
    %v140 = vmul.f32 %v125, %v139
    %v141 = vsub.f32 %v117, %v140
    %v142 = vlaneseq
    %v143 = vshrl.u32 %v142, 7
    %v144 = vsub.s32 0, %v143
    %v145 = vrot.slane %v139, %v144
    %v146 = vmul.f32 %v113, %v145
    %v147 = vlaneseq
    %v148 = vshrl.u32 %v147, 7
    %v149 = vsub.s32 0, %v148
    %v150 = vrot.slane %v141, %v149
    %v151 = vadd.f32 %v146, %v150
    %v152 = vmax.f32 %v151, 0.0
    %v153 = vld [vmem:[#allocation4 + $0x20] sm:$0xff]
    %v154 = vld [vmem:[#allocation4 + $0x28] sm:$0xff]
    %v155 = vld [vmem:[#allocation4 + $0x30] sm:$0xff]
    %v156 = vld [vmem:[#allocation4 + $0x38] sm:$0xff]
    %v157 = vld [vmem:[#allocation4 + $0x40] sm:$0xff]
    %v158 = vld [vmem:[#allocation4 + $0x48] sm:$0xff]
    %v159 = vld [vmem:[#allocation4 + $0x50] sm:$0xff]
    %v160 = vld [vmem:[#allocation4 + $0x58] sm:$0xff]
    %vm161 = vcmask 523264
    %v163 = vsel %vm161, %v152, 0
    %165 = vmatprep.subr.mxu0 0.0
    %166 = vmatpush1.msra.mxu0 %v153
    %167 = vmatprep.subr.mxu0 0.0
    %168 = vmatpush1.msra.mxu0 %v154
    %169 = vmatprep.subr.mxu0 0.0
    %170 = vmatpush1.msra.mxu0 %v155
    %171 = vmatprep.subr.mxu0 0.0
    %172 = vmatpush1.msra.mxu0 %v156
    %173 = vmatprep.subr.mxu0 0.0
    %174 = vmatpush1.msra.mxu0 %v157
    %175 = vmatprep.subr.mxu0 0.0
    %176 = vmatpush1.msra.mxu0 %v158
    %177 = vmatprep.subr.mxu0 0.0
    %178 = vmatpush1.msra.mxu0 %v159
    %179 = vmatprep.subr.mxu0 0.0
    %180 = vmatpush1.msra.mxu0 %v160
    %181 = vmatprep.subr.mxu0 0.0
    %182 = vmatpush1.msra.mxu0 0.0
    %183 = vmatprep.subr.mxu0 0.0
    %184 = vmatpush1.msra.mxu0 0.0
    %185 = vmatprep.subr.mxu0 0.0
    %186 = vmatpush1.msra.mxu0 0.0
    %187 = vmatprep.subr.mxu0 0.0
    %188 = vmatpush1.msra.mxu0 0.0
    %189 = vmatprep.subr.mxu0 0.0
    %190 = vmatpush1.msra.mxu0 0.0
    %191 = vmatprep.subr.mxu0 0.0
    %192 = vmatpush1.msra.mxu0 0.0
    %193 = vmatprep.subr.mxu0 0.0
    %194 = vmatpush1.msra.mxu0 0.0
    %195 = vmatprep.subr.mxu0 0.0
    %196 = vmatpush1.msra.mxu0 0.0
    %197 = vmatprep.subr.mxu0 0.0
    %198 = vmatpush1.msra.mxu0 0.0
    %199 = vmatprep.subr.mxu0 0.0
    %200 = vmatpush1.msra.mxu0 0.0
    %201 = vmatprep.subr.mxu0 0.0
    %202 = vmatpush1.msra.mxu0 0.0
    %203 = vmatprep.subr.mxu0 0.0
    %204 = vmatpush1.msra.mxu0 0.0
    %205 = vmatprep.subr.mxu0 0.0
    %206 = vmatpush1.msra.mxu0 0.0
    %207 = vmatprep.subr.mxu0 0.0
    %208 = vmatpush1.msra.mxu0 0.0
    %209 = vmatprep.subr.mxu0 0.0
    %210 = vmatpush1.msra.mxu0 0.0
    %211 = vmatprep.subr.mxu0 0.0
    %212 = vmatpush1.msra.mxu0 0.0
    %213 = vmatprep.subr.mxu0 0.0
    %214 = vmatpush1.msra.mxu0 0.0
    %215 = vmatprep.subr.mxu0 0.0
    %216 = vmatpush1.msra.mxu0 0.0
    %217 = vmatprep.subr.mxu0 0.0
    %218 = vmatpush1.msra.mxu0 0.0
    %219 = vmatprep.subr.mxu0 0.0
    %220 = vmatpush1.msra.mxu0 0.0
    %221 = vmatprep.subr.mxu0 0.0
    %222 = vmatpush1.msra.mxu0 0.0
    %223 = vmatprep.subr.mxu0 0.0
    %224 = vmatpush1.msra.mxu0 0.0
    %225 = vmatprep.subr.mxu0 0.0
    %226 = vmatpush1.msra.mxu0 0.0
    %227 = vmatprep.subr.mxu0 0.0
    %228 = vmatpush1.msra.mxu0 0.0
    %229 = vmatprep.mubr.f32.mxu0 0.0
    %230 = vmatmul.mubr.f32.gmra.mrb[0].mxu0 %v163
    %v231 = vpop.f32.mrb[0].mxu0
    %v232 = vadd.f32 0.0, %v231
    %v233 = vpop.f32.mrb[0].mxu0
    %234 = vdwg.mxu0
    %v235 = vld [vmem:[#allocation4 + $0xe2] sm:$0x1]
    %v236 = vld [vmem:[#allocation4 + $0xe3] sm:$0x1]
    %v237 = vrot.slane %v232, 4
    %v238 = vadd.f32 %v232, %v237
    %v239 = vrot.slane %v238, 2
    %v240 = vadd.f32 %v238, %v239
    %v241 = vrot.slane %v240, 1
    %v242 = vadd.f32 %v240, %v241
    %v243 = vmul.f32 %v242, %v124
    %v244 = vmul.f32 %v232, %v232
    %v245 = vrot.slane %v244, 4
    %v246 = vadd.f32 %v244, %v245
    %v247 = vrot.slane %v246, 2
    %v248 = vadd.f32 %v246, %v247
    %v249 = vrot.slane %v248, 1
    %v250 = vadd.f32 %v248, %v249
    %v251 = vmul.f32 %v250, %v124
    %v252 = vmul.f32 %v243, %v243
    %v253 = vsub.f32 %v251, %v252
    %v254 = vmax.f32 %v253, 0.0
    %v255 = vadd.f32 %v254, 1e-05
    %v256 = vrsqrt.pop %v255
    %v257 = vmul.f32 %v235, %v256
    %v258 = vmul.f32 %v243, %v257
    %v259 = vsub.f32 %v236, %v258
    %v260 = vlaneseq
    %v261 = vshrl.u32 %v260, 7
    %v262 = vsub.s32 0, %v261
    %v263 = vrot.slane %v257, %v262
    %v264 = vmul.f32 %v232, %v263
    %v265 = vlaneseq
    %v266 = vshrl.u32 %v265, 7
    %v267 = vsub.s32 0, %v266
    %v268 = vrot.slane %v259, %v267
    %v269 = vadd.f32 %v264, %v268
    %v270 = vmax.f32 %v269, 0.0
    %v271 = vld [vmem:[#allocation4 + $0x60] sm:$0xff]
    %v272 = vld [vmem:[#allocation4 + $0x68] sm:$0xff]
    %v273 = vld [vmem:[#allocation4 + $0x70] sm:$0xff]
    %v274 = vld [vmem:[#allocation4 + $0x78] sm:$0xff]
    %v275 = vld [vmem:[#allocation4 + $0x80] sm:$0xff]
    %v276 = vld [vmem:[#allocation4 + $0x88] sm:$0xff]
    %v277 = vld [vmem:[#allocation4 + $0x90] sm:$0xff]
    %v278 = vld [vmem:[#allocation4 + $0x98] sm:$0xff]
    %v279 = vld [vmem:[#allocation4 + $0xa0] sm:$0xff]
    %v280 = vld [vmem:[#allocation4 + $0xa8] sm:$0xff]
    %v281 = vld [vmem:[#allocation4 + $0xb0] sm:$0xff]
    %v282 = vld [vmem:[#allocation4 + $0xb8] sm:$0xff]
    %v283 = vld [vmem:[#allocation4 + $0xc0] sm:$0xff]
    %v284 = vld [vmem:[#allocation4 + $0xc8] sm:$0xff]
    %v285 = vld [vmem:[#allocation4 + $0xd0] sm:$0xff]
    %v286 = vld [vmem:[#allocation4 + $0xd8] sm:$0xff]
    %287 = vmatprep.subr.mxu0 0.0
    %288 = vmatpush1.msra.mxu0 %v271
    %289 = vmatprep.subr.mxu0 0.0
    %290 = vmatpush1.msra.mxu0 %v272
    %291 = vmatprep.subr.mxu0 0.0
    %292 = vmatpush1.msra.mxu0 %v273
    %293 = vmatprep.subr.mxu0 0.0
    %294 = vmatpush1.msra.mxu0 %v274
    %295 = vmatprep.subr.mxu0 0.0
    %296 = vmatpush1.msra.mxu0 %v275
    %297 = vmatprep.subr.mxu0 0.0
    %298 = vmatpush1.msra.mxu0 %v276
    %299 = vmatprep.subr.mxu0 0.0
    %300 = vmatpush1.msra.mxu0 %v277
    %301 = vmatprep.subr.mxu0 0.0
    %302 = vmatpush1.msra.mxu0 %v278
    %303 = vmatprep.subr.mxu0 0.0
    %304 = vmatpush1.msra.mxu0 %v279
    %305 = vmatprep.subr.mxu0 0.0
    %306 = vmatpush1.msra.mxu0 %v280
    %307 = vmatprep.subr.mxu0 0.0
    %308 = vmatpush1.msra.mxu0 %v281
    %309 = vmatprep.subr.mxu0 0.0
    %310 = vmatpush1.msra.mxu0 %v282
    %311 = vmatprep.subr.mxu0 0.0
    %312 = vmatpush1.msra.mxu0 %v283
    %313 = vmatprep.subr.mxu0 0.0
    %314 = vmatpush1.msra.mxu0 %v284
    %315 = vmatprep.subr.mxu0 0.0
    %316 = vmatpush1.msra.mxu0 %v285
    %317 = vmatprep.subr.mxu0 0.0
    %318 = vmatpush1.msra.mxu0 %v286
    %319 = vmatprep.subr.mxu0 0.0
    %320 = vmatpush1.msra.mxu0 0.0
    %321 = vmatprep.subr.mxu0 0.0
    %322 = vmatpush1.msra.mxu0 0.0
    %323 = vmatprep.subr.mxu0 0.0
    %324 = vmatpush1.msra.mxu0 0.0
    %325 = vmatprep.subr.mxu0 0.0
    %326 = vmatpush1.msra.mxu0 0.0
    %327 = vmatprep.subr.mxu0 0.0
    %328 = vmatpush1.msra.mxu0 0.0
    %329 = vmatprep.subr.mxu0 0.0
    %330 = vmatpush1.msra.mxu0 0.0
    %331 = vmatprep.subr.mxu0 0.0
    %332 = vmatpush1.msra.mxu0 0.0
    %333 = vmatprep.subr.mxu0 0.0
    %334 = vmatpush1.msra.mxu0 0.0
    %335 = vmatprep.subr.mxu0 0.0
    %336 = vmatpush1.msra.mxu0 0.0
    %337 = vmatprep.subr.mxu0 0.0
    %338 = vmatpush1.msra.mxu0 0.0
    %339 = vmatprep.subr.mxu0 0.0
    %340 = vmatpush1.msra.mxu0 0.0
    %341 = vmatprep.subr.mxu0 0.0
    %342 = vmatpush1.msra.mxu0 0.0
    %343 = vmatprep.subr.mxu0 0.0
    %344 = vmatpush1.msra.mxu0 0.0
    %345 = vmatprep.subr.mxu0 0.0
    %346 = vmatpush1.msra.mxu0 0.0
    %347 = vmatprep.subr.mxu0 0.0
    %348 = vmatpush1.msra.mxu0 0.0
    %349 = vmatprep.subr.mxu0 0.0
    %350 = vmatpush1.msra.mxu0 0.0
    %351 = vmatprep.mubr.f32.mxu0 0.0
    %352 = vmatmul.mubr.f32.gmra.mrb[0].mxu0 %v270
    %v353 = vpop.f32.mrb[0].mxu0
    %v354 = vadd.f32 0.0, %v353
    %v355 = vpop.f32.mrb[0].mxu0
    %356 = vdwg.mxu0
    %v357 = vld [vmem:[#allocation4 + $0xe4] sm:$0x1]
    %v358 = vld [vmem:[#allocation4 + $0xe5] sm:$0x1]
    %v359 = vrot.slane %v354, 4
    %v360 = vadd.f32 %v354, %v359
    %v361 = vrot.slane %v360, 2
    %v362 = vadd.f32 %v360, %v361
    %v363 = vrot.slane %v362, 1
    %v364 = vadd.f32 %v362, %v363
    %v365 = vmul.f32 %v364, %v124
    %v366 = vmul.f32 %v354, %v354
    %v367 = vrot.slane %v366, 4
    %v368 = vadd.f32 %v366, %v367
    %v369 = vrot.slane %v368, 2
    %v370 = vadd.f32 %v368, %v369
    %v371 = vrot.slane %v370, 1
    %v372 = vadd.f32 %v370, %v371
    %v373 = vmul.f32 %v372, %v124
    %v374 = vmul.f32 %v365, %v365
    %v375 = vsub.f32 %v373, %v374
    %v376 = vmax.f32 %v375, 0.0
    %v377 = vadd.f32 %v376, 1e-05
    %v378 = vrsqrt.pop %v377
    %v379 = vmul.f32 %v357, %v378
    %v380 = vmul.f32 %v365, %v379
    %v381 = vsub.f32 %v358, %v380
    %v382 = vlaneseq
    %v383 = vshrl.u32 %v382, 7
    %v384 = vsub.s32 0, %v383
    %v385 = vrot.slane %v379, %v384
    %v386 = vmul.f32 %v354, %v385
    %v387 = vlaneseq
    %v388 = vshrl.u32 %v387, 7
    %v389 = vsub.s32 0, %v388
    %v390 = vrot.slane %v381, %v389
    %v391 = vadd.f32 %v386, %v390
    %v392 = vmax.f32 %v391, 0.0
    %v393 = vld [vmem:[#allocation4 + $0xe6] sm:$0x1]
    %v394 = vld [vmem:[#allocation4 + $0xe7] sm:$0x1]
    %v395 = vlaneseq
    %v396 = vshrl.u32 %v395, 7
    %v397 = vsub.s32 0, %v396
    %v398 = vrot.slane %v393, %v397
    %v399 = vmul.f32 %v392, %v398
    %400 = vadd.xlane.f32.xlu0 %v399
    %v401 = vpop.xlane.xlu0 %400
    %v402 = vlaneseq
    %v403 = vshrl.u32 %v402, 7
    %v404 = vsub.s32 0, %v403
    %v405 = vrot.slane %v394, %v404
    %v406 = vadd.f32 %v401, %v405
    %v407 = vmul.f32 %v406, 0.5
    %v408 = vtanh.pop %v407
    %v409 = vadd.f32 %v408, 1.0
    %v410 = vmul.f32 %v409, 0.5
    %vm411 = vcmask 7168
    %412 = vst.msk [vmem:[%s2] sm:$0xff] %vm411, %v410
    // Predicated region
    $region18: #{tpu_custom_call.1} parent=1 // pred_check
      _
    $region19: #{tpu_custom_call.1} parent=1 // pred_check_branch
      %414 = sbr.rel (0) target = $region21
    $region20: #{tpu_custom_call.1} parent=1 // pred_region
      _
    $region21: #{tpu_custom_call.1} parent=1 // pred_fallthru
      _
    // Predicated region
    $region22: #{tpu_custom_call.1} parent=1 // pred_check
      _
    $region23: #{tpu_custom_call.1} parent=1 // pred_check_branch
      %416 = sbr.rel (0) target = $region25
    $region24: #{tpu_custom_call.1} parent=1 // pred_region
      _
    $region25: #{tpu_custom_call.1} parent=1 // pred_fallthru
      _
    %417 = vsyncpa [#allocation3], 1
    %418 = vsyncpa [#allocation5], 1

</llo_original>
